<compile_context>
chip_gen: v7x
topology: tpu7x:2x2x1
jax: 0.10.0
libtpu: 0.0.40
codegen_flags: <defaults>
</compile_context>

<pallas_src>
import jax
import jax.numpy as jnp
from jax.experimental import pallas as pl
from jax.experimental.pallas import tpu as pltpu


def _copy_kernel(x_ref, o_ref):
    # Matched (ROW_TILE, T_TILE) tiles for input and output: pure copy.
    o_ref[...] = x_ref[...]


def _round_up(v, m):
    return ((v + m - 1) // m) * m


def _tile_budget():
    """(per-VMEM-buffer byte budget, vmem_limit_bytes) tuned per TPU gen."""
    try:
        kind = jax.devices()[0].device_kind.lower()
    except Exception:
        kind = ""
    if "v7" in kind:
        # Highest HBM BW (per-step overhead hurts most) but smallest VMEM
        # (64 MiB physical / 32 MiB scoped): 4 live buffers x 6 MiB = 24 MiB.
        return 6 << 20, 32 << 20
    if "v6" in kind:
        # 128 MiB physical VMEM: 4 x 8 MiB buffers is safe.
        return 8 << 20, 64 << 20
    # v5e / unknown: default scoped VMEM is only 16 MiB -> raise to 32 MiB.
    return 4 << 20, 32 << 20


def same_pad(x, kernel_size, causal=False, force_pallas=False):
    """SamePad.forward for (N, C, T) inputs.

    Small tensors (or t_out < 128) take a fused XLA slice; larger tensors go
    through a tiled, double-buffered Pallas HBM copy at roofline.
    """
    if causal:
        remove = kernel_size - 1
    else:
        remove = 1 if kernel_size % 2 == 0 else 0

    if remove == 0:
        return x  # identity; nothing to trim

    n, c, t = x.shape
    t_out = t - remove
    if t_out <= 0:
        raise ValueError(
            f"SamePad would remove the entire time axis (T={t}, remove={remove})"
        )

    rows = n * c
    itemsize = jnp.dtype(x.dtype).itemsize
    total_out_bytes = rows * t_out * itemsize

    # Fast path: XLA fuses this slice into the consumer; the Pallas kernel
    # would pay a full read+write plus launch overhead for nothing.
    if not force_pallas and (total_out_bytes < (1 << 20) or t_out < 128):
        return x[:, :, :t_out]

    budget_bytes, vmem_limit = _tile_budget()

    # Sublane multiple per dtype: 8 for 32-bit, 16 for 16-bit, 32 for 8-bit.
    sublane = max(8, 32 // itemsize)

    # Time tile: cover t_out in as few 128-lane blocks as possible, capped by
    # the per-buffer budget (assuming the minimum legal row tile).
    t_tile_cap = max(128, (budget_bytes // (sublane * itemsize)) // 128 * 128)
    t_tile = min(_round_up(t_out, 128), t_tile_cap)

    # Row tile: re-expand to fill the per-buffer budget (no hard 512 cap).
    row_fit = (budget_bytes // (t_tile * itemsize)) // sublane * sublane
    row_tile = min(rows, max(sublane, row_fit))

    x2 = x.reshape(rows, t)

    n_t_blocks = pl.cdiv(t_out, t_tile)
    if n_t_blocks == 1:
        # 1-D grid over rows: leading "parallel" axis, no time-axis bookkeeping.
        grid = (pl.cdiv(rows, row_tile),)
        in_specs = [pl.BlockSpec((row_tile, t_tile), lambda i: (i, 0))]
        out_specs = pl.BlockSpec((row_tile, t_tile), lambda i: (i, 0))
        dim_sems = ("parallel",)
    else:
        grid = (pl.cdiv(rows, row_tile), n_t_blocks)
        in_specs = [pl.BlockSpec((row_tile, t_tile), lambda i, j: (i, j))]
        out_specs = pl.BlockSpec((row_tile, t_tile), lambda i, j: (i, j))
        dim_sems = ("parallel", "parallel")

    out2 = pl.pallas_call(
        _copy_kernel,
        out_shape=jax.ShapeDtypeStruct((rows, t_out), x.dtype),
        grid=grid,
        in_specs=in_specs,
        out_specs=out_specs,
        compiler_params=pltpu.CompilerParams(
            dimension_semantics=dim_sems,
            vmem_limit_bytes=vmem_limit,
        ),
        cost_estimate=pl.CostEstimate(
            flops=0,
            transcendentals=0,
            bytes_accessed=int(2 * rows * t_out * itemsize),
        ),
    )(x2)

    return out2.reshape(n, c, t_out)


if __name__ == "__main__":
    key = jax.random.PRNGKey(0)
    k1, k2, k3 = jax.random.split(key, 3)

    # (batch=2, channels=4, time=16) -- PyTorch NCW conv1d feature-map layout.
    # Small tensors take the fused-slice fast path.
    x = jax.random.normal(k1, (2, 4, 16), dtype=jnp.float32)

    # Case 1: non-causal, even kernel_size -> remove = 1 (fast path).
    y_even = same_pad(x, kernel_size=4, causal=False)
    jax.block_until_ready(y_even)
    assert y_even.shape == (2, 4, 15)
    assert jnp.array_equal(y_even, x[:, :, :-1])

    # Case 1b: same small tensor, forced through the Pallas kernel
    # (exercises masked partial row + time blocks at tiny extents).
    y_even_pk = same_pad(x, kernel_size=4, causal=False, force_pallas=True)
    jax.block_until_ready(y_even_pk)
    assert jnp.array_equal(y_even_pk, x[:, :, :-1])

    # Case 2: non-causal, odd kernel_size -> remove = 0 (identity).
    y_odd = same_pad(x, kernel_size=3, causal=False)
    jax.block_until_ready(y_odd)
    assert jnp.array_equal(y_odd, x)

    # Case 3: causal -> remove = kernel_size - 1 (fast path).
    y_causal = same_pad(x, kernel_size=4, causal=True)
    jax.block_until_ready(y_causal)
    assert y_causal.shape == (2, 4, 13)
    assert jnp.array_equal(y_causal, x[:, :, :-3])

    # Case 4: forced Pallas path with a masked partial time block
    # (t_out=143 -> one 256-lane block, stores masked to 143 lanes).
    x_mid = jax.random.normal(k2, (4, 130, 144), dtype=jnp.float32)
    y_mid = same_pad(x_mid, kernel_size=6, causal=False, force_pallas=True)
    jax.block_until_ready(y_mid)
    assert y_mid.shape == (4, 130, 143)
    assert jnp.array_equal(y_mid, x_mid[:, :, :-1])

    # Case 5: BEATs-like feature-map shape, auto path selects the Pallas
    # kernel (>1 MiB, t_out >= 128) with a multi-block row grid.
    x_big = jax.random.normal(k3, (4, 768, 500), dtype=jnp.float32)
    y_big = same_pad(x_big, kernel_size=2, causal=True)  # remove = 1
    jax.block_until_ready(y_big)
    assert y_big.shape == (4, 768, 499)
    assert jnp.array_equal(y_big, x_big[:, :, :-1])

    print("KERNEL_OK")
</pallas_src>

<mosaic_0001>
module attributes {stable_mosaic.version = 11 : i64} {
  func.func @_copy_kernel(%arg0: i32, %arg1: memref<8x128xf32, #tpu.memory_space<vmem>>, %arg2: memref<8x128xf32, #tpu.memory_space<vmem>>) attributes {dimension_semantics = [#tpu.dimension_semantics<parallel>], iteration_bounds = array<i64: 1>, scalar_prefetch = 0 : i64, scratch_operands = 0 : i64, tpu.core_type = #tpu.core_type<tc>, window_params = [{transform_indices = @transform_0, window_bounds = array<i64: 8, 128>}, {transform_indices = @transform_1, window_bounds = array<i64: 8, 128>}]} {
    %c0 = arith.constant 0 : index
    %c0_0 = arith.constant 0 : index
    %0 = vector.load %arg1[%c0, %c0_0] : memref<8x128xf32, #tpu.memory_space<vmem>>, vector<8x128xf32>
    %c0_1 = arith.constant 0 : index
    %c0_2 = arith.constant 0 : index
    %1 = vector.load %arg2[%c0_1, %c0_2] : memref<8x128xf32, #tpu.memory_space<vmem>>, vector<8x128xf32>
    tpu.vector_store %arg2[%c0_1, %c0_2], %0 {strides = array<i32>} : memref<8x128xf32, #tpu.memory_space<vmem>>, vector<8x128xf32>,
    return
  }
  func.func @transform_0(%arg0: i32) -> (i32, i32) {
    %c0_i32 = arith.constant 0 : i32
    %c0_i32_0 = arith.constant 0 : i32
    return %arg0, %c0_i32 : i32, i32
  }
  func.func @transform_1(%arg0: i32) -> (i32, i32) {
    %c0_i32 = arith.constant 0 : i32
    %c0_i32_0 = arith.constant 0 : i32
    return %arg0, %c0_i32 : i32, i32
  }
}

</mosaic_0001>

<llo_original>
// kernel: tpu_custom_call.1
$region0: #{tpu_custom_call.1}
  #allocation0 [shape = 'u32[]', space=smem, size = 0x4, offset = 0x4, fixed_abs, tag = 'smem constant byte address 0x4 - core index']
  #allocation1 [shape = 'u32[144,128]{1,0:T(1,128)}', space=vmem, size = 0x12000, scoped, tag = 'internal scratch']
  %s0 = inlined_call_operand.hbm [shape: f32[8,16], index: 0, kind: input, shape index: {}]
  %s1 = inlined_call_operand.hbm [shape: f32[8,15], index: 1, kind: output, shape index: {}]
  %s2 = sld [smem:[#allocation0]]
  $region18: #{tpu_custom_call.1} parent=0
    _
  %s4 = ssub.s32 1, %s2
  %s5 = scalar_select 0, %s4, %s2
  $region1: #{tpu_custom_call.1} parent=0
    #allocation2 [shape = 'u8[4096]{0}', space=vmem, size = 0x1000, scoped, tag = 'input window, operand 0, single buffered']
    #allocation3 [shape = 's32[1]{0}', space=sflag, size = 0x4, scoped, tag = 'scoped memory for tpu_custom_call.1']
    #allocation4 [shape = 's32[1]{0}', space=sflag, size = 0x4, scoped, tag = 'scoped memory for tpu_custom_call.1']
    #allocation5 [shape = 'u8[4096]{0}', space=vmem, size = 0x1000, scoped, tag = 'output window, operand 0, single buffered']
    %6 = vsyncpa [#allocation3], 0
    %7 = vsyncpa [#allocation4], 0
    // Predicated region
    $region2: #{tpu_custom_call.1} parent=1 // pred_check
      _
    $region3: #{tpu_custom_call.1} parent=1 // pred_check_branch
      %9 = sbr.rel (0) target = $region5
    $region4: #{tpu_custom_call.1} parent=1 // pred_region
      %s11 = ssub.s32 128, 128
      %12 = vsyncadd [#allocation3], %s11
      %s14 = sshll.u32 [#allocation2], 4
      %s15 = int_to_ptr.vmem [resolvable:$true] %s14
      %17 = dma.hbm_to_vmem [thread:$0]  %s0, 128, %s15, [#allocation3]
    $region5: #{tpu_custom_call.1} parent=1 // pred_fallthru
      _
    // Predicated region
    $region6: #{tpu_custom_call.1} parent=1 // pred_check
      _
    $region7: #{tpu_custom_call.1} parent=1 // pred_check_branch
      %19 = sbr.rel (0) target = $region9
    $region8: #{tpu_custom_call.1} parent=1 // pred_region
      %20 = dma.done [#allocation3], 128
    $region9: #{tpu_custom_call.1} parent=1 // pred_fallthru
      _
    %v21 = vld [vmem:[#allocation2] sm:$0xff]
    %22 = vst [vmem:[#allocation5] sm:$0xff] %v21
    // Predicated region
    $region10: #{tpu_custom_call.1} parent=1 // pred_check
      _
    $region11: #{tpu_custom_call.1} parent=1 // pred_check_branch
      %24 = sbr.rel (0) target = $region13
    $region12: #{tpu_custom_call.1} parent=1 // pred_region
      %s26 = ssub.s32 128, 128
      %27 = vsyncadd [#allocation4], %s26
      %s29 = sshll.u32 [#allocation5], 4
      %s30 = int_to_ptr.vmem [resolvable:$true] %s29
      %32 = dma.vmem_to_hbm [thread:$0]  %s30, 128, %s1, [#allocation4]
    $region13: #{tpu_custom_call.1} parent=1 // pred_fallthru
      _
    // Predicated region
    $region14: #{tpu_custom_call.1} parent=1 // pred_check
      _
    $region15: #{tpu_custom_call.1} parent=1 // pred_check_branch
      %34 = sbr.rel (0) target = $region17
    $region16: #{tpu_custom_call.1} parent=1 // pred_region
      %35 = dma.done [#allocation4], 128
    $region17: #{tpu_custom_call.1} parent=1 // pred_fallthru
      _
    %36 = vsyncpa [#allocation3], 1
    %37 = vsyncpa [#allocation4], 1

</llo_original>
